<compile_context>
chip_gen: v7x
topology: tpu7x:2x2x1
jax: 0.10.0
libtpu: 0.0.40
codegen_flags: <defaults>
</compile_context>

<pallas_src>
import numpy as np
import jax
import jax.numpy as jnp
from jax import lax
from jax.experimental import pallas as pl
from jax.experimental.pallas import tpu as pltpu

_LANE = 128


def _round_up(v, m):
    return (v + m - 1) // m * m


def _make_textcnn_kernel(B_tile, L, D, n_offsets, max_pad, f_blk, cols, compute_dtype):
    """Fused conv-bank + bias + ReLU + max-over-time kernel for one batch tile."""
    rows = B_tile * L

    def kernel(x_ref, w_ref, b_ref, out_ref):
        # x_ref  : (B_tile, L, D)   original activation tile (f32, straight from HBM)
        # w_ref  : (D, cols)        offset-packed conv weights (compute dtype)
        # b_ref  : (1, 128)         packed conv biases (f32, zero past f_blk)
        # out_ref: (B_tile, 128)    pooled features (f32)
        x = x_ref[...].reshape(rows, D)
        if x.dtype != compute_dtype:
            x = x.astype(compute_dtype)        # cast on the VMEM tile, not in HBM
        # One MXU matmul for every conv and every tap (f32 accumulation).
        y = jnp.dot(x, w_ref[...], preferred_element_type=jnp.float32)   # (rows, cols)

        # Column block o (width f_blk) holds the taps that read x[l + s], s = o - max_pad,
        # so conv_out[l] = sum_o y[l + s, block_o].  Align each block with one XLU
        # sublane roll (L shift) and one XLU lane roll (block -> lanes [0, f_blk)),
        # then accumulate full-width.  The L-validity mask reproduces Conv1d zero
        # padding and also kills the sublane roll's cross-batch wrap rows.
        l_pos = lax.broadcasted_iota(jnp.int32, (B_tile, L, cols), 1).reshape(rows, cols)
        acc = pltpu.roll(y, shift=(-(max_pad * f_blk)) % cols, axis=1)    # s = 0 block
        for o in range(n_offsets):
            s = o - max_pad
            if s == 0:
                continue
            shifted = pltpu.roll(y, shift=(-s) % rows, axis=0)            # row r <- y[r + s]
            shifted = pltpu.roll(shifted, shift=(-(o * f_blk)) % cols, axis=1)
            valid = jnp.logical_and(l_pos + s >= 0, l_pos + s < L)
            acc = acc + jnp.where(valid, shifted, 0.0)

        # Bias + ReLU (f32 VPU) + max over time (XLU reduce).  Lanes >= f_blk hold
        # junk wrapped in by the lane rolls; they are sliced away in the wrapper.
        acc = acc[:, :_LANE]
        acc = jnp.maximum(acc + b_ref[...], 0.0)
        out_ref[...] = jnp.max(acc.reshape(B_tile, L, _LANE), axis=1).astype(out_ref.dtype)

    return kernel


def textcnn_forward(x, conv_ws, conv_bs, lin_w, lin_b, kernel_sizes,
                    compute_dtype=jnp.bfloat16):
    """TextCNN forward.  x: (B, L, D=300) f32.  Returns (B, 2) f32.

    conv_ws[i] has shape (k_i, D, C): tap j is the (D, C) matmul operand,
    i.e. the PyTorch Conv1d weight (C, D, k_i) transposed.
    """
    kernel_sizes = tuple(int(k) for k in kernel_sizes)
    # TODO(synk): even kernel sizes change the Conv1d output length (L+1 in
    # PyTorch with padding=k//2); only odd kernel sizes are fused here.
    assert all(k % 2 == 1 for k in kernel_sizes), "odd kernel sizes only"

    B, L, D = map(int, x.shape)
    n_convs = len(kernel_sizes)
    C = int(conv_ws[0].shape[-1])
    f_blk = n_convs * C
    # TODO(synk): tile the channel axis when the concatenated conv channels
    # exceed one 128-lane block.
    assert f_blk <= _LANE, "len(kernel_size) * num_channel must be <= 128"

    max_pad = max(kernel_sizes) // 2
    n_offsets = 2 * max_pad + 1
    cols = _round_up(n_offsets * f_blk, _LANE)
    compute_dtype = jnp.dtype(compute_dtype)
    itemsize_c = compute_dtype.itemsize

    # ---- batch-tile sizing against the real per-tile VMEM footprint:
    # double-buffered f32 x stream + in-kernel cast copy + f32 y/iota + acc temps.
    per_batch_row = L * (2 * D * 4 + D * itemsize_c + 2 * cols * 4 + 4 * _LANE * 4)
    budget = 36 * 1024 * 1024
    B_tile = max(8, (budget // per_batch_row) // 8 * 8)
    if B >= 16:
        # Keep at least two grid steps so both v7x TensorCores get work.
        B_tile = min(B_tile, _round_up(-(-B // 2), 8))
    if B_tile >= B:
        B_tile = B                       # single block: block dims == full array dims
    grid_b = -(-B // B_tile)
    B_out = grid_b * B_tile              # only the tiny pooled output is padded; x is NOT copied

    # ---- operand packing (weights / bias only; x itself goes to the kernel untouched) ----
    # Offset-major packed weights: block o (columns [o*f_blk, (o+1)*f_blk)) holds,
    # for conv idx (sub-columns idx*C:(idx+1)*C), the tap that reads x[l + (o - max_pad)];
    # zero where that conv has no such tap.  Columns past n_offsets*f_blk are zero.
    w_all = jnp.zeros((D, cols), jnp.float32)
    for idx, (k, w) in enumerate(zip(kernel_sizes, conv_ws)):
        pad_k = k // 2
        for j in range(k):
            o = j - pad_k + max_pad
            c0 = o * f_blk + idx * C
            w_all = w_all.at[:, c0:c0 + C].set(w[j].astype(jnp.float32))
    w_all = w_all.astype(compute_dtype)

    bias = jnp.zeros((1, _LANE), jnp.float32)
    bias = bias.at[0, :f_blk].set(
        jnp.concatenate([b.reshape(-1).astype(jnp.float32) for b in conv_bs]))

    kernel = _make_textcnn_kernel(B_tile, L, D, n_offsets, max_pad, f_blk, cols,
                                  compute_dtype)

    cost = pl.CostEstimate(
        flops=2 * B_out * L * D * cols,
        transcendentals=0,
        bytes_accessed=(B * L * D * x.dtype.itemsize          # x read straight from HBM
                        + w_all.size * itemsize_c + bias.size * 4
                        + B_out * _LANE * 4),
    )

    feat = pl.pallas_call(
        kernel,
        out_shape=jax.ShapeDtypeStruct((B_out, _LANE), jnp.float32),
        grid=(grid_b,),
        in_specs=[
            pl.BlockSpec((B_tile, L, D), lambda b: (b, 0, 0)),   # x tile (no HBM copy)
            pl.BlockSpec((D, cols), lambda b: (0, 0)),           # packed weights (resident)
            pl.BlockSpec((1, _LANE), lambda b: (0, 0)),          # packed biases (resident)
        ],
        out_specs=pl.BlockSpec((B_tile, _LANE), lambda b: (b, 0)),
        compiler_params=pltpu.CompilerParams(
            # TODO(synk): use pltpu.CORE_PARALLEL on the batch axis for explicit
            # v7x two-TensorCore sharding; "parallel" is the portable choice here.
            dimension_semantics=("parallel",),
            vmem_limit_bytes=48 * 1024 * 1024,
        ),
        cost_estimate=cost,
    )(x, w_all, bias)

    # TODO(synk): for very long sequences add an "arbitrary" trailing L grid axis
    # with a (B_tile, 128) running-max VMEM scratch and a 2*max_pad row halo.

    feat = feat[:B, :f_blk]
    # The (n*C, 2) Linear stays outside the kernel: the pooled-feature slab is
    # lane-friendly and this matmul is too tiny to benefit from the MXU.
    return feat @ lin_w + lin_b


def textcnn_reference(x, conv_ws, conv_bs, lin_w, lin_b, kernel_sizes):
    """Pure-NumPy float64 reference matching the PyTorch forward."""
    x = np.asarray(x, np.float64)
    B, L, D = x.shape
    feats = []
    for k, w, b in zip(kernel_sizes, conv_ws, conv_bs):
        k = int(k)
        pad = k // 2
        w = np.asarray(w, np.float64)
        b = np.asarray(b, np.float64)
        xp = np.pad(x, ((0, 0), (pad, pad), (0, 0)))
        l_out = L + 2 * pad - k + 1
        acc = np.broadcast_to(b.reshape(1, 1, -1), (B, l_out, b.shape[0])).copy()
        for j in range(k):
            acc += np.einsum('bld,dc->blc', xp[:, j:j + l_out, :], w[j])
        feats.append(np.maximum(acc, 0.0).max(axis=1))
    feat = np.concatenate(feats, axis=-1)
    return feat @ np.asarray(lin_w, np.float64) + np.asarray(lin_b, np.float64)


if __name__ == "__main__":
    # Small shapes consistent with the module: embedding dim fixed at 300 by
    # Conv1d(300, num_channel, k); seq=16, num_channel=8, kernel_size=(3, 5).
    D = 300
    C = 8
    kernel_sizes = (3, 5)
    L = 16

    key = jax.random.PRNGKey(0)
    k_x, k_x2, k_cw, k_cb, k_lw, k_lb = jax.random.split(key, 6)

    conv_ws, conv_bs = [], []
    cw_keys = jax.random.split(k_cw, len(kernel_sizes))
    cb_keys = jax.random.split(k_cb, len(kernel_sizes))
    for i, k in enumerate(kernel_sizes):
        bound = 1.0 / (D * k) ** 0.5
        # Stored as (k, D, C): torch Conv1d weight (C, D, k) transposed so each
        # tap is a (D, C) matmul operand.
        conv_ws.append(jax.random.uniform(
            cw_keys[i], (k, D, C), jnp.float32, -bound, bound))
        conv_bs.append(jax.random.uniform(
            cb_keys[i], (C,), jnp.float32, -bound, bound))

    F_dim = len(kernel_sizes) * C
    lbound = 1.0 / F_dim ** 0.5
    lin_w = jax.random.uniform(k_lw, (F_dim, 2), jnp.float32, -lbound, lbound)
    lin_b = jax.random.uniform(k_lb, (2,), jnp.float32, -lbound, lbound)

    def check(xv, compute_dtype, tol):
        ref = textcnn_reference(xv, conv_ws, conv_bs, lin_w, lin_b, kernel_sizes)
        out = jax.block_until_ready(
            textcnn_forward(xv, conv_ws, conv_bs, lin_w, lin_b, kernel_sizes,
                            compute_dtype=compute_dtype))
        assert out.shape == (xv.shape[0], 2), out.shape
        out64 = np.asarray(out, np.float64)
        err = float(np.max(np.abs(out64 - ref)))
        assert np.allclose(out64, ref, atol=tol, rtol=tol), \
            f"{compute_dtype} max err {err}"

    # batch=2: single-block grid; f32 operands track the f64 reference tightly.
    x_small = jax.random.normal(k_x, (2, L, D), dtype=jnp.float32)
    check(x_small, jnp.float32, 3e-2)
    # bf16 matmul operands (f32 accumulation, in-kernel cast): looser check.
    check(x_small, jnp.bfloat16, 8e-2)

    # batch=16: exercises the multi-step grid path (two fully in-bounds tiles).
    x_big = jax.random.normal(k_x2, (16, L, D), dtype=jnp.float32)
    check(x_big, jnp.bfloat16, 8e-2)

    print("KERNEL_OK")
</pallas_src>

<mosaic_0001>
module attributes {stable_mosaic.version = 11 : i64} {
  func.func @kernel(%arg0: i32, %arg1: memref<2x16x300xf32, #tpu.memory_space<vmem>>, %arg2: memref<300x128xf32, #tpu.memory_space<vmem>>, %arg3: memref<1x128xf32, #tpu.memory_space<vmem>>, %arg4: memref<2x128xf32, #tpu.memory_space<vmem>>) attributes {dimension_semantics = [#tpu.dimension_semantics<parallel>], iteration_bounds = array<i64: 1>, scalar_prefetch = 0 : i64, scratch_operands = 0 : i64, tpu.core_type = #tpu.core_type<tc>, window_params = [{transform_indices = @transform_0, window_bounds = array<i64: 2, 16, 300>}, {pipeline_mode = #tpu.pipeline_mode<synchronous>, transform_indices = @transform_1, window_bounds = array<i64: 300, 128>}, {pipeline_mode = #tpu.pipeline_mode<synchronous>, transform_indices = @transform_2, window_bounds = array<i64: 1, 128>}, {transform_indices = @transform_3, window_bounds = array<i64: 2, 128>}]} {
    %c0 = arith.constant 0 : index
    %c0_0 = arith.constant 0 : index
    %c0_1 = arith.constant 0 : index
    %0 = vector.load %arg1[%c0, %c0_0, %c0_1] : memref<2x16x300xf32, #tpu.memory_space<vmem>>, vector<2x16x300xf32>
    %1 = vector.shape_cast %0 : vector<2x16x300xf32> to vector<32x300xf32>
    %c0_2 = arith.constant 0 : index
    %c0_3 = arith.constant 0 : index
    %2 = vector.load %arg2[%c0_2, %c0_3] : memref<300x128xf32, #tpu.memory_space<vmem>>, vector<300x128xf32>
    %cst = arith.constant dense<0.000000e+00> : vector<32x128xf32>
    %3 = tpu.matmul %1, %2, %cst {dimension_numbers = #tpu.dot_dimension_numbers<[1], [0], [0], [1], [0, 0, 1, 1], [], []>} : vector<32x300xf32>, vector<300x128xf32>, vector<32x128xf32> -> vector<32x128xf32>
    %4 = tpu.iota {dimensions = array<i32: 1>} : vector<2x16x128xi32>
    %5 = vector.shape_cast %4 : vector<2x16x128xi32> to vector<32x128xi32>
    %c96_i32 = arith.constant 96 : i32
    %6 = tpu.dynamic_rotate %3 by %c96_i32 dim 1 : vector<32x128xf32>, i32 -> vector<32x128xf32>
    %c2_i32 = arith.constant 2 : i32
    %7 = tpu.dynamic_rotate %3 by %c2_i32 dim 0 : vector<32x128xf32>, i32 -> vector<32x128xf32>
    %c0_i32 = arith.constant 0 : i32
    %8 = tpu.dynamic_rotate %7 by %c0_i32 dim 1 : vector<32x128xf32>, i32 -> vector<32x128xf32>
    %c-2_i32 = arith.constant -2 : i32
    %9 = vector.broadcast %c-2_i32 : i32 to vector<32x128xi32>
    %10 = arith.addi %5, %9 : vector<32x128xi32>
    %c0_i32_4 = arith.constant 0 : i32
    %11 = vector.broadcast %c0_i32_4 : i32 to vector<32x128xi32>
    %12 = arith.cmpi sge, %10, %11 : vector<32x128xi32>
    %c-2_i32_5 = arith.constant -2 : i32
    %13 = vector.broadcast %c-2_i32_5 : i32 to vector<32x128xi32>
    %14 = arith.addi %5, %13 : vector<32x128xi32>
    %c16_i32 = arith.constant 16 : i32
    %15 = vector.broadcast %c16_i32 : i32 to vector<32x128xi32>
    %16 = arith.cmpi slt, %14, %15 : vector<32x128xi32>
    %17 = arith.andi %12, %16 : vector<32x128xi1>
    %cst_6 = arith.constant 0.000000e+00 : f32
    %18 = vector.broadcast %cst_6 : f32 to vector<32x128xf32>
    %19 = arith.select %17, %8, %18 : vector<32x128xi1>, vector<32x128xf32>
    %20 = arith.addf %6, %19 : vector<32x128xf32>
    %c1_i32 = arith.constant 1 : i32
    %21 = tpu.dynamic_rotate %3 by %c1_i32 dim 0 : vector<32x128xf32>, i32 -> vector<32x128xf32>
    %c112_i32 = arith.constant 112 : i32
    %22 = tpu.dynamic_rotate %21 by %c112_i32 dim 1 : vector<32x128xf32>, i32 -> vector<32x128xf32>
    %c-1_i32 = arith.constant -1 : i32
    %23 = vector.broadcast %c-1_i32 : i32 to vector<32x128xi32>
    %24 = arith.addi %5, %23 : vector<32x128xi32>
    %c0_i32_7 = arith.constant 0 : i32
    %25 = vector.broadcast %c0_i32_7 : i32 to vector<32x128xi32>
    %26 = arith.cmpi sge, %24, %25 : vector<32x128xi32>
    %c-1_i32_8 = arith.constant -1 : i32
    %27 = vector.broadcast %c-1_i32_8 : i32 to vector<32x128xi32>
    %28 = arith.addi %5, %27 : vector<32x128xi32>
    %c16_i32_9 = arith.constant 16 : i32
    %29 = vector.broadcast %c16_i32_9 : i32 to vector<32x128xi32>
    %30 = arith.cmpi slt, %28, %29 : vector<32x128xi32>
    %31 = arith.andi %26, %30 : vector<32x128xi1>
    %cst_10 = arith.constant 0.000000e+00 : f32
    %32 = vector.broadcast %cst_10 : f32 to vector<32x128xf32>
    %33 = arith.select %31, %22, %32 : vector<32x128xi1>, vector<32x128xf32>
    %34 = arith.addf %20, %33 : vector<32x128xf32>
    %c31_i32 = arith.constant 31 : i32
    %35 = tpu.dynamic_rotate %3 by %c31_i32 dim 0 : vector<32x128xf32>, i32 -> vector<32x128xf32>
    %c80_i32 = arith.constant 80 : i32
    %36 = tpu.dynamic_rotate %35 by %c80_i32 dim 1 : vector<32x128xf32>, i32 -> vector<32x128xf32>
    %c1_i32_11 = arith.constant 1 : i32
    %37 = vector.broadcast %c1_i32_11 : i32 to vector<32x128xi32>
    %38 = arith.addi %5, %37 : vector<32x128xi32>
    %c0_i32_12 = arith.constant 0 : i32
    %39 = vector.broadcast %c0_i32_12 : i32 to vector<32x128xi32>
    %40 = arith.cmpi sge, %38, %39 : vector<32x128xi32>
    %c1_i32_13 = arith.constant 1 : i32
    %41 = vector.broadcast %c1_i32_13 : i32 to vector<32x128xi32>
    %42 = arith.addi %5, %41 : vector<32x128xi32>
    %c16_i32_14 = arith.constant 16 : i32
    %43 = vector.broadcast %c16_i32_14 : i32 to vector<32x128xi32>
    %44 = arith.cmpi slt, %42, %43 : vector<32x128xi32>
    %45 = arith.andi %40, %44 : vector<32x128xi1>
    %cst_15 = arith.constant 0.000000e+00 : f32
    %46 = vector.broadcast %cst_15 : f32 to vector<32x128xf32>
    %47 = arith.select %45, %36, %46 : vector<32x128xi1>, vector<32x128xf32>
    %48 = arith.addf %34, %47 : vector<32x128xf32>
    %c30_i32 = arith.constant 30 : i32
    %49 = tpu.dynamic_rotate %3 by %c30_i32 dim 0 : vector<32x128xf32>, i32 -> vector<32x128xf32>
    %c64_i32 = arith.constant 64 : i32
    %50 = tpu.dynamic_rotate %49 by %c64_i32 dim 1 : vector<32x128xf32>, i32 -> vector<32x128xf32>
    %c2_i32_16 = arith.constant 2 : i32
    %51 = vector.broadcast %c2_i32_16 : i32 to vector<32x128xi32>
    %52 = arith.addi %5, %51 : vector<32x128xi32>
    %c0_i32_17 = arith.constant 0 : i32
    %53 = vector.broadcast %c0_i32_17 : i32 to vector<32x128xi32>
    %54 = arith.cmpi sge, %52, %53 : vector<32x128xi32>
    %c2_i32_18 = arith.constant 2 : i32
    %55 = vector.broadcast %c2_i32_18 : i32 to vector<32x128xi32>
    %56 = arith.addi %5, %55 : vector<32x128xi32>
    %c16_i32_19 = arith.constant 16 : i32
    %57 = vector.broadcast %c16_i32_19 : i32 to vector<32x128xi32>
    %58 = arith.cmpi slt, %56, %57 : vector<32x128xi32>
    %59 = arith.andi %54, %58 : vector<32x128xi1>
    %cst_20 = arith.constant 0.000000e+00 : f32
    %60 = vector.broadcast %cst_20 : f32 to vector<32x128xf32>
    %61 = arith.select %59, %50, %60 : vector<32x128xi1>, vector<32x128xf32>
    %62 = arith.addf %48, %61 : vector<32x128xf32>
    %c0_21 = arith.constant 0 : index
    %c0_22 = arith.constant 0 : index
    %63 = vector.load %arg3[%c0_21, %c0_22] : memref<1x128xf32, #tpu.memory_space<vmem>>, vector<1x128xf32>
    %64 = vector.broadcast %63 : vector<1x128xf32> to vector<32x128xf32>
    %65 = arith.addf %62, %64 : vector<32x128xf32>
    %cst_23 = arith.constant 0.000000e+00 : f32
    %66 = vector.broadcast %cst_23 : f32 to vector<32x128xf32>
    %67 = arith.maximumf %65, %66 : vector<32x128xf32>
    %68 = vector.shape_cast %67 : vector<32x128xf32> to vector<2x16x128xf32>
    %cst_24 = arith.constant dense<0xFF800000> : vector<2x128xf32>
    %69 = vector.multi_reduction <maximumf>, %68, %cst_24 [1] : vector<2x16x128xf32> to vector<2x128xf32>
    %c0_25 = arith.constant 0 : index
    %c0_26 = arith.constant 0 : index
    %70 = vector.load %arg4[%c0_25, %c0_26] : memref<2x128xf32, #tpu.memory_space<vmem>>, vector<2x128xf32>
    tpu.vector_store %arg4[%c0_25, %c0_26], %69 {strides = array<i32>} : memref<2x128xf32, #tpu.memory_space<vmem>>, vector<2x128xf32>,
    return
  }
  func.func @transform_0(%arg0: i32) -> (i32, i32, i32) {
    %c0_i32 = arith.constant 0 : i32
    %c0_i32_0 = arith.constant 0 : i32
    %c0_i32_1 = arith.constant 0 : i32
    return %arg0, %c0_i32, %c0_i32_0 : i32, i32, i32
  }
  func.func @transform_1(%arg0: i32) -> (i32, i32) {
    %c0_i32 = arith.constant 0 : i32
    %c0_i32_0 = arith.constant 0 : i32
    %c0_i32_1 = arith.constant 0 : i32
    return %c0_i32, %c0_i32_0 : i32, i32
  }
  func.func @transform_2(%arg0: i32) -> (i32, i32) {
    %c0_i32 = arith.constant 0 : i32
    %c0_i32_0 = arith.constant 0 : i32
    %c0_i32_1 = arith.constant 0 : i32
    return %c0_i32, %c0_i32_0 : i32, i32
  }
  func.func @transform_3(%arg0: i32) -> (i32, i32) {
    %c0_i32 = arith.constant 0 : i32
    %c0_i32_0 = arith.constant 0 : i32
    return %arg0, %c0_i32 : i32, i32
  }
}

</mosaic_0001>

<llo_original>
// kernel: tpu_custom_call.1
$region0: #{tpu_custom_call.1}
  #allocation0 [shape = 'u32[]', space=smem, size = 0x4, offset = 0x4, fixed_abs, tag = 'smem constant byte address 0x4 - core index']
  #allocation1 [shape = 'u32[144,128]{1,0:T(1,128)}', space=vmem, size = 0x12000, scoped, tag = 'internal scratch']
  %s0 = inlined_call_operand.hbm [shape: f32[2,16,300], index: 0, kind: input, shape index: {}]
  %s1 = inlined_call_operand.hbm [shape: f32[300,128], index: 1, kind: input, shape index: {}]
  %s2 = inlined_call_operand.vmem [shape: f32[1,128], index: 2, kind: input, shape index: {}]
  %s3 = inlined_call_operand.hbm [shape: f32[2,128], index: 3, kind: output, shape index: {}]
  %s4 = sld [smem:[#allocation0]]
  $region30: #{tpu_custom_call.1} parent=0
    _
  %s6 = ssub.s32 1, %s4
  %s7 = scalar_select 0, %s6, %s4
  $region1: #{tpu_custom_call.1} parent=0
    #allocation2 [shape = 'u8[49152]{0}', space=vmem, size = 0xc000, scoped, tag = 'input window, operand 0, single buffered']
    #allocation3 [shape = 's32[1]{0}', space=sflag, size = 0x4, scoped, tag = 'scoped memory for tpu_custom_call.1']
    #allocation4 [shape = 's32[1]{0}', space=sflag, size = 0x4, scoped, tag = 'scoped memory for tpu_custom_call.1']
    #allocation5 [shape = 'u8[155648]{0}', space=vmem, size = 0x26000, scoped, tag = 'input window, operand 1, single buffered']
    #allocation6 [shape = 's32[1]{0}', space=sflag, size = 0x4, scoped, tag = 'scoped memory for tpu_custom_call.1']
    #allocation7 [shape = 'u8[1024]{0}', space=vmem, size = 0x400, scoped, tag = 'output window, operand 0, single buffered']
    %8 = vsyncpa [#allocation3], 0
    %9 = vsyncpa [#allocation6], 0
    %10 = vsyncpa [#allocation4], 0
    // Predicated region
    $region2: #{tpu_custom_call.1} parent=1 // pred_check
      _
    $region3: #{tpu_custom_call.1} parent=1 // pred_check_branch
      %12 = sbr.rel (0) target = $region5
    $region4: #{tpu_custom_call.1} parent=1 // pred_region
      %s14 = ssub.s32 1536, 1536
      %15 = vsyncadd [#allocation3], %s14
      %s16 = sshll.u32 [#allocation2], 4
      %s17 = int_to_ptr.vmem [resolvable:$true] %s16
      %22 = dma.hbm_to_vmem [thread:$0]  %s0, 1536, %s17, [#allocation3], 384, 384, 24
    $region5: #{tpu_custom_call.1} parent=1 // pred_fallthru
      _
    // Predicated region
    $region6: #{tpu_custom_call.1} parent=1 // pred_check
      _
    $region7: #{tpu_custom_call.1} parent=1 // pred_check_branch
      %24 = sbr.rel (0) target = $region9
    $region8: #{tpu_custom_call.1} parent=1 // pred_region
      %s26 = ssub.s32 4864, 4864
      %27 = vsyncadd [#allocation6], %s26
      %s28 = sshll.u32 [#allocation5], 4
      %s29 = int_to_ptr.vmem [resolvable:$true] %s28
      %34 = dma.hbm_to_vmem [thread:$0]  %s1, 4864, %s29, [#allocation6], 128, 128, 8
    $region9: #{tpu_custom_call.1} parent=1 // pred_fallthru
      _
    // Predicated region
    $region10: #{tpu_custom_call.1} parent=1 // pred_check
      _
    $region11: #{tpu_custom_call.1} parent=1 // pred_check_branch
      %36 = sbr.rel (0) target = $region13
    $region12: #{tpu_custom_call.1} parent=1 // pred_region
      _
    $region13: #{tpu_custom_call.1} parent=1 // pred_fallthru
      _
    // Predicated region
    $region14: #{tpu_custom_call.1} parent=1 // pred_check
      _
    $region15: #{tpu_custom_call.1} parent=1 // pred_check_branch
      %38 = sbr.rel (0) target = $region17
    $region16: #{tpu_custom_call.1} parent=1 // pred_region
      %39 = dma.done [#allocation3], 1536
    $region17: #{tpu_custom_call.1} parent=1 // pred_fallthru
      _
    // Predicated region
    $region18: #{tpu_custom_call.1} parent=1 // pred_check
      _
    $region19: #{tpu_custom_call.1} parent=1 // pred_check_branch
      %41 = sbr.rel (0) target = $region21
    $region20: #{tpu_custom_call.1} parent=1 // pred_region
      %42 = dma.done [#allocation6], 4864
    $region21: #{tpu_custom_call.1} parent=1 // pred_fallthru
      _
    %v43 = vld [vmem:[#allocation2] sm:$0xff]
    %v44 = vld [vmem:[#allocation2 + $0x8] sm:$0xff]
    %v45 = vld [vmem:[#allocation2 + $0x10] sm:$0xff]
    %v46 = vld [vmem:[#allocation2 + $0x18] sm:$0xff]
    %v47 = vld [vmem:[#allocation2 + $0x20] sm:$0xff]
    %v48 = vld [vmem:[#allocation2 + $0x28] sm:$0xff]
    %v49 = vld [vmem:[#allocation2 + $0x30] sm:$0xff]
    %v50 = vld [vmem:[#allocation2 + $0x38] sm:$0xff]
    %v51 = vld [vmem:[#allocation2 + $0x40] sm:$0xff]
    %v52 = vld [vmem:[#allocation2 + $0x48] sm:$0xff]
    %v53 = vld [vmem:[#allocation2 + $0x50] sm:$0xff]
    %v54 = vld [vmem:[#allocation2 + $0x58] sm:$0xff]
    %v55 = vld [vmem:[#allocation5] sm:$0xff]
    %v56 = vld [vmem:[#allocation5 + $0x8] sm:$0xff]
    %v57 = vld [vmem:[#allocation5 + $0x10] sm:$0xff]
    %v58 = vld [vmem:[#allocation5 + $0x18] sm:$0xff]
    %v59 = vld [vmem:[#allocation5 + $0x20] sm:$0xff]
    %v60 = vld [vmem:[#allocation5 + $0x28] sm:$0xff]
    %v61 = vld [vmem:[#allocation5 + $0x30] sm:$0xff]
    %v62 = vld [vmem:[#allocation5 + $0x38] sm:$0xff]
    %v63 = vld [vmem:[#allocation5 + $0x40] sm:$0xff]
    %v64 = vld [vmem:[#allocation5 + $0x48] sm:$0xff]
    %v65 = vld [vmem:[#allocation5 + $0x50] sm:$0xff]
    %v66 = vld [vmem:[#allocation5 + $0x58] sm:$0xff]
    %v67 = vld [vmem:[#allocation5 + $0x60] sm:$0xff]
    %v68 = vld [vmem:[#allocation5 + $0x68] sm:$0xff]
    %v69 = vld [vmem:[#allocation5 + $0x70] sm:$0xff]
    %v70 = vld [vmem:[#allocation5 + $0x78] sm:$0xff]
    %v71 = vld [vmem:[#allocation5 + $0x80] sm:$0xff]
    %v72 = vld [vmem:[#allocation5 + $0x88] sm:$0xff]
    %v73 = vld [vmem:[#allocation5 + $0x90] sm:$0xff]
    %v74 = vld [vmem:[#allocation5 + $0x98] sm:$0xff]
    %v75 = vld [vmem:[#allocation5 + $0xa0] sm:$0xff]
    %v76 = vld [vmem:[#allocation5 + $0xa8] sm:$0xff]
    %v77 = vld [vmem:[#allocation5 + $0xb0] sm:$0xff]
    %v78 = vld [vmem:[#allocation5 + $0xb8] sm:$0xff]
    %v79 = vld [vmem:[#allocation5 + $0xc0] sm:$0xff]
    %v80 = vld [vmem:[#allocation5 + $0xc8] sm:$0xff]
    %v81 = vld [vmem:[#allocation5 + $0xd0] sm:$0xff]
    %v82 = vld [vmem:[#allocation5 + $0xd8] sm:$0xff]
    %v83 = vld [vmem:[#allocation5 + $0xe0] sm:$0xff]
    %v84 = vld [vmem:[#allocation5 + $0xe8] sm:$0xff]
    %v85 = vld [vmem:[#allocation5 + $0xf0] sm:$0xff]
    %v86 = vld [vmem:[#allocation5 + $0xf8] sm:$0xff]
    %v87 = vld [vmem:[#allocation5 + $0x100] sm:$0xff]
    %v88 = vld [vmem:[#allocation5 + $0x108] sm:$0xff]
    %v89 = vld [vmem:[#allocation5 + $0x110] sm:$0xff]
    %v90 = vld [vmem:[#allocation5 + $0x118] sm:$0xff]
    %v91 = vld [vmem:[#allocation5 + $0x120] sm:$0xff]
    %v92 = vld [vmem:[#allocation5 + $0x128] sm:$0xf]
    %vm93 = vcmask 359424
    %v95 = vsel %vm93, %v45, 0
    %v98 = vsel %vm93, %v48, 0
    %v101 = vsel %vm93, %v51, 0
    %v104 = vsel %vm93, %v54, 0
    %vm106 = vcmask 1043456
    %v108 = vsel %vm106, %v92, 0
    %110 = vmatprep.subr.mxu0 0.0
    %111 = vmatpush1.msra.mxu0 %v55
    %112 = vmatprep.subr.mxu0 0.0
    %113 = vmatpush1.msra.mxu0 %v56
    %114 = vmatprep.subr.mxu0 0.0
    %115 = vmatpush1.msra.mxu0 %v57
    %116 = vmatprep.subr.mxu0 0.0
    %117 = vmatpush1.msra.mxu0 %v58
    %118 = vmatprep.subr.mxu0 0.0
    %119 = vmatpush1.msra.mxu0 %v59
    %120 = vmatprep.subr.mxu0 0.0
    %121 = vmatpush1.msra.mxu0 %v60
    %122 = vmatprep.subr.mxu0 0.0
    %123 = vmatpush1.msra.mxu0 %v61
    %124 = vmatprep.subr.mxu0 0.0
    %125 = vmatpush1.msra.mxu0 %v62
    %126 = vmatprep.subr.mxu0 0.0
    %127 = vmatpush1.msra.mxu0 %v63
    %128 = vmatprep.subr.mxu0 0.0
    %129 = vmatpush1.msra.mxu0 %v64
    %130 = vmatprep.subr.mxu0 0.0
    %131 = vmatpush1.msra.mxu0 %v65
    %132 = vmatprep.subr.mxu0 0.0
    %133 = vmatpush1.msra.mxu0 %v66
    %134 = vmatprep.subr.mxu0 0.0
    %135 = vmatpush1.msra.mxu0 %v67
    %136 = vmatprep.subr.mxu0 0.0
    %137 = vmatpush1.msra.mxu0 %v68
    %138 = vmatprep.subr.mxu0 0.0
    %139 = vmatpush1.msra.mxu0 %v69
    %140 = vmatprep.subr.mxu0 0.0
    %141 = vmatpush1.msra.mxu0 %v70
    %142 = vmatprep.subr.mxu0 0.0
    %143 = vmatpush1.msra.mxu0 %v71
    %144 = vmatprep.subr.mxu0 0.0
    %145 = vmatpush1.msra.mxu0 %v72
    %146 = vmatprep.subr.mxu0 0.0
    %147 = vmatpush1.msra.mxu0 %v73
    %148 = vmatprep.subr.mxu0 0.0
    %149 = vmatpush1.msra.mxu0 %v74
    %150 = vmatprep.subr.mxu0 0.0
    %151 = vmatpush1.msra.mxu0 %v75
    %152 = vmatprep.subr.mxu0 0.0
    %153 = vmatpush1.msra.mxu0 %v76
    %154 = vmatprep.subr.mxu0 0.0
    %155 = vmatpush1.msra.mxu0 %v77
    %156 = vmatprep.subr.mxu0 0.0
    %157 = vmatpush1.msra.mxu0 %v78
    %158 = vmatprep.subr.mxu0 0.0
    %159 = vmatpush1.msra.mxu0 %v79
    %160 = vmatprep.subr.mxu0 0.0
    %161 = vmatpush1.msra.mxu0 %v80
    %162 = vmatprep.subr.mxu0 0.0
    %163 = vmatpush1.msra.mxu0 %v81
    %164 = vmatprep.subr.mxu0 0.0
    %165 = vmatpush1.msra.mxu0 %v82
    %166 = vmatprep.subr.mxu0 0.0
    %167 = vmatpush1.msra.mxu0 %v83
    %168 = vmatprep.subr.mxu0 0.0
    %169 = vmatpush1.msra.mxu0 %v84
    %170 = vmatprep.subr.mxu0 0.0
    %171 = vmatpush1.msra.mxu0 %v85
    %172 = vmatprep.subr.mxu0 0.0
    %173 = vmatpush1.msra.mxu0 %v86
    %174 = vmatprep.mubr.f32.mxu0 %v44
    %175 = vmatmul.mubr.f32.gmra.mrb[0].mxu0 %v43
    %v176 = vpop.f32.mrb[0].mxu0
    %v177 = vadd.f32 0.0, %v176
    %v178 = vpop.f32.mrb[0].mxu0
    %179 = vmatprep.mubr.f32.mxu0 %v47
    %180 = vmatmul.mubr.f32.gmra.mrb[0].mxu0 %v46
    %v181 = vpop.f32.mrb[0].mxu0
    %v182 = vadd.f32 0.0, %v181
    %v183 = vpop.f32.mrb[0].mxu0
    %184 = vmatprep.mubr.f32.mxu0 %v50
    %185 = vmatmul.mubr.f32.gmra.mrb[0].mxu0 %v49
    %v186 = vpop.f32.mrb[0].mxu0
    %v187 = vadd.f32 0.0, %v186
    %v188 = vpop.f32.mrb[0].mxu0
    %189 = vmatprep.mubr.f32.mxu0 %v53
    %190 = vmatmul.mubr.f32.gmra.mrb[0].mxu0 %v52
    %v191 = vpop.f32.mrb[0].mxu0
    %v192 = vadd.f32 0.0, %v191
    %v193 = vpop.f32.mrb[0].mxu0
    %194 = vdwg.mxu0
    %195 = vmatprep.subr.mxu0 0.0
    %196 = vmatpush1.msra.mxu0 %v87
    %197 = vmatprep.subr.mxu0 0.0
    %198 = vmatpush1.msra.mxu0 %v88
    %199 = vmatprep.subr.mxu0 0.0
    %200 = vmatpush1.msra.mxu0 %v89
    %201 = vmatprep.subr.mxu0 0.0
    %202 = vmatpush1.msra.mxu0 %v90
    %203 = vmatprep.subr.mxu0 0.0
    %204 = vmatpush1.msra.mxu0 %v91
    %205 = vmatprep.subr.mxu0 0.0
    %206 = vmatpush1.msra.mxu0 %v108
    %207 = vmatprep.subr.mxu0 0.0
    %208 = vmatpush1.msra.mxu0 0.0
    %209 = vmatprep.subr.mxu0 0.0
    %210 = vmatpush1.msra.mxu0 0.0
    %211 = vmatprep.subr.mxu0 0.0
    %212 = vmatpush1.msra.mxu0 0.0
    %213 = vmatprep.subr.mxu0 0.0
    %214 = vmatpush1.msra.mxu0 0.0
    %215 = vmatprep.subr.mxu0 0.0
    %216 = vmatpush1.msra.mxu0 0.0
    %217 = vmatprep.subr.mxu0 0.0
    %218 = vmatpush1.msra.mxu0 0.0
    %219 = vmatprep.subr.mxu0 0.0
    %220 = vmatpush1.msra.mxu0 0.0
    %221 = vmatprep.subr.mxu0 0.0
    %222 = vmatpush1.msra.mxu0 0.0
    %223 = vmatprep.subr.mxu0 0.0
    %224 = vmatpush1.msra.mxu0 0.0
    %225 = vmatprep.subr.mxu0 0.0
    %226 = vmatpush1.msra.mxu0 0.0
    %227 = vmatprep.subr.mxu0 0.0
    %228 = vmatpush1.msra.mxu0 0.0
    %229 = vmatprep.subr.mxu0 0.0
    %230 = vmatpush1.msra.mxu0 0.0
    %231 = vmatprep.subr.mxu0 0.0
    %232 = vmatpush1.msra.mxu0 0.0
    %233 = vmatprep.subr.mxu0 0.0
    %234 = vmatpush1.msra.mxu0 0.0
    %235 = vmatprep.subr.mxu0 0.0
    %236 = vmatpush1.msra.mxu0 0.0
    %237 = vmatprep.subr.mxu0 0.0
    %238 = vmatpush1.msra.mxu0 0.0
    %239 = vmatprep.subr.mxu0 0.0
    %240 = vmatpush1.msra.mxu0 0.0
    %241 = vmatprep.subr.mxu0 0.0
    %242 = vmatpush1.msra.mxu0 0.0
    %243 = vmatprep.subr.mxu0 0.0
    %244 = vmatpush1.msra.mxu0 0.0
    %245 = vmatprep.subr.mxu0 0.0
    %246 = vmatpush1.msra.mxu0 0.0
    %247 = vmatprep.subr.mxu0 0.0
    %248 = vmatpush1.msra.mxu0 0.0
    %249 = vmatprep.subr.mxu0 0.0
    %250 = vmatpush1.msra.mxu0 0.0
    %251 = vmatprep.subr.mxu0 0.0
    %252 = vmatpush1.msra.mxu0 0.0
    %253 = vmatprep.subr.mxu0 0.0
    %254 = vmatpush1.msra.mxu0 0.0
    %255 = vmatprep.subr.mxu0 0.0
    %256 = vmatpush1.msra.mxu0 0.0
    %257 = vmatprep.subr.mxu0 0.0
    %258 = vmatpush1.msra.mxu0 0.0
    %259 = vmatprep.mubr.f32.mxu0 0.0
    %260 = vmatmul.mubr.f32.gmra.mrb[0].mxu0 %v95
    %v261 = vpop.f32.mrb[0].mxu0
    %v262 = vadd.f32 %v177, %v261
    %v263 = vpop.f32.mrb[0].mxu0
    %264 = vmatprep.mubr.f32.mxu0 0.0
    %265 = vmatmul.mubr.f32.gmra.mrb[0].mxu0 %v98
    %v266 = vpop.f32.mrb[0].mxu0
    %v267 = vadd.f32 %v182, %v266
    %v268 = vpop.f32.mrb[0].mxu0
    %269 = vmatprep.mubr.f32.mxu0 0.0
    %270 = vmatmul.mubr.f32.gmra.mrb[0].mxu0 %v101
    %v271 = vpop.f32.mrb[0].mxu0
    %v272 = vadd.f32 %v187, %v271
    %v273 = vpop.f32.mrb[0].mxu0
    %274 = vmatprep.mubr.f32.mxu0 0.0
    %275 = vmatmul.mubr.f32.gmra.mrb[0].mxu0 %v104
    %v276 = vpop.f32.mrb[0].mxu0
    %v277 = vadd.f32 %v192, %v276
    %v278 = vpop.f32.mrb[0].mxu0
    %279 = vdwg.mxu0
    %v280 = vlaneseq
    %v281 = vshrl.u32 %v280, 7
    %v282 = vadd.s32 %v281, 8
    %283 = vrot.lane.b32.xlu0 %v262, 96
    %v284 = vpop.permute.xlu0 %283
    %285 = vrot.lane.b32.xlu0 %v267, 96
    %v286 = vpop.permute.xlu0 %285
    %287 = vrot.lane.b32.xlu0 %v272, 96
    %v288 = vpop.permute.xlu0 %287
    %289 = vrot.lane.b32.xlu0 %v277, 96
    %v290 = vpop.permute.xlu0 %289
    %v291 = vrot.slane %v262, 6
    %v292 = vrot.slane %v267, 6
    %v293 = vrot.slane %v272, 6
    %v294 = vrot.slane %v277, 6
    %vm295 = vcmp.lt.s32.totalorder %v281, 2
    %v296 = vsel %vm295, %v293, %v294
    %v297 = vsel %vm295, %v292, %v293
    %v298 = vsel %vm295, %v291, %v292
    %v299 = vsel %vm295, %v294, %v291
    %v300 = vadd.s32 %v281, 4294967294
    %v301 = vadd.s32 %v282, 4294967294
    %vm302 = vcmp.ge.s32.totalorder %v300, 0
    %vm303 = vcmp.ge.s32.totalorder %v301, 0
    %vm304 = vcmp.lt.s32.totalorder %v300, 16
    %vm305 = vcmp.lt.s32.totalorder %v301, 16
    %vm306 = vmand %vm302, %vm304
    %vm307 = vmand %vm303, %vm305
    %v308 = vsel %vm306, %v299, 0.0
    %v309 = vsel %vm307, %v298, 0.0
    %v310 = vsel %vm306, %v297, 0.0
    %v311 = vsel %vm307, %v296, 0.0
    %v312 = vadd.f32 %v284, %v308
    %v313 = vadd.f32 %v286, %v309
    %v314 = vadd.f32 %v288, %v310
    %v315 = vadd.f32 %v290, %v311
    %v316 = vrot.slane %v262, 7
    %v317 = vrot.slane %v267, 7
    %v318 = vrot.slane %v272, 7
    %v319 = vrot.slane %v277, 7
    %vm320 = vcmp.lt.s32.totalorder %v281, 1
    %v321 = vsel %vm320, %v318, %v319
    %v322 = vsel %vm320, %v317, %v318
    %v323 = vsel %vm320, %v316, %v317
    %v324 = vsel %vm320, %v319, %v316
    %325 = vrot.lane.b32.xlu0 %v324, 112
    %v326 = vpop.permute.xlu0 %325
    %327 = vrot.lane.b32.xlu0 %v323, 112
    %v328 = vpop.permute.xlu0 %327
    %329 = vrot.lane.b32.xlu0 %v322, 112
    %v330 = vpop.permute.xlu0 %329
    %331 = vrot.lane.b32.xlu0 %v321, 112
    %v332 = vpop.permute.xlu0 %331
    %v333 = vadd.s32 %v281, 4294967295
    %v334 = vadd.s32 %v282, 4294967295
    %vm335 = vcmp.ge.s32.totalorder %v333, 0
    %vm336 = vcmp.ge.s32.totalorder %v334, 0
    %vm337 = vcmp.lt.s32.totalorder %v333, 16
    %vm338 = vcmp.lt.s32.totalorder %v334, 16
    %vm339 = vmand %vm335, %vm337
    %vm340 = vmand %vm336, %vm338
    %v341 = vsel %vm339, %v326, 0.0
    %v342 = vsel %vm340, %v328, 0.0
    %v343 = vsel %vm339, %v330, 0.0
    %v344 = vsel %vm340, %v332, 0.0
    %v345 = vadd.f32 %v312, %v341
    %v346 = vadd.f32 %v313, %v342
    %v347 = vadd.f32 %v314, %v343
    %v348 = vadd.f32 %v315, %v344
    %v349 = vrot.slane %v262, 1
    %v350 = vrot.slane %v267, 1
    %v351 = vrot.slane %v272, 1
    %v352 = vrot.slane %v277, 1
    %vm353 = vcmp.lt.s32.totalorder %v281, 7
    %v354 = vsel %vm353, %v351, %v352
    %v355 = vsel %vm353, %v350, %v351
    %v356 = vsel %vm353, %v349, %v350
    %v357 = vsel %vm353, %v352, %v349
    %358 = vrot.lane.b32.xlu0 %v356, 80
    %v359 = vpop.permute.xlu0 %358
    %360 = vrot.lane.b32.xlu0 %v355, 80
    %v361 = vpop.permute.xlu0 %360
    %362 = vrot.lane.b32.xlu0 %v354, 80
    %v363 = vpop.permute.xlu0 %362
    %364 = vrot.lane.b32.xlu0 %v357, 80
    %v365 = vpop.permute.xlu0 %364
    %v366 = vadd.s32 %v281, 1
    %v367 = vadd.s32 %v282, 1
    %vm368 = vcmp.ge.s32.totalorder %v366, 0
    %vm369 = vcmp.ge.s32.totalorder %v367, 0
    %vm370 = vcmp.lt.s32.totalorder %v366, 16
    %vm371 = vcmp.lt.s32.totalorder %v367, 16
    %vm372 = vmand %vm368, %vm370
    %vm373 = vmand %vm369, %vm371
    %v374 = vsel %vm372, %v359, 0.0
    %v375 = vsel %vm373, %v361, 0.0
    %v376 = vsel %vm372, %v363, 0.0
    %v377 = vsel %vm373, %v365, 0.0
    %v378 = vadd.f32 %v345, %v374
    %v379 = vadd.f32 %v346, %v375
    %v380 = vadd.f32 %v347, %v376
    %v381 = vadd.f32 %v348, %v377
    %v382 = vrot.slane %v262, 2
    %v383 = vrot.slane %v267, 2
    %v384 = vrot.slane %v272, 2
    %v385 = vrot.slane %v277, 2
    %vm386 = vcmp.lt.s32.totalorder %v281, 6
    %v387 = vsel %vm386, %v384, %v385
    %v388 = vsel %vm386, %v383, %v384
    %v389 = vsel %vm386, %v382, %v383
    %v390 = vsel %vm386, %v385, %v382
    %391 = vrot.lane.b32.xlu0 %v389, 64
    %v392 = vpop.permute.xlu0 %391
    %393 = vrot.lane.b32.xlu0 %v388, 64
    %v394 = vpop.permute.xlu0 %393
    %395 = vrot.lane.b32.xlu0 %v387, 64
    %v396 = vpop.permute.xlu0 %395
    %397 = vrot.lane.b32.xlu0 %v390, 64
    %v398 = vpop.permute.xlu0 %397
    %v399 = vadd.s32 %v281, 2
    %v400 = vadd.s32 %v282, 2
    %vm401 = vcmp.ge.s32.totalorder %v399, 0
    %vm402 = vcmp.ge.s32.totalorder %v400, 0
    %vm403 = vcmp.lt.s32.totalorder %v399, 16
    %vm404 = vcmp.lt.s32.totalorder %v400, 16
    %vm405 = vmand %vm401, %vm403
    %vm406 = vmand %vm402, %vm404
    %v407 = vsel %vm405, %v392, 0.0
    %v408 = vsel %vm406, %v394, 0.0
    %v409 = vsel %vm405, %v396, 0.0
    %v410 = vsel %vm406, %v398, 0.0
    %v411 = vadd.f32 %v378, %v407
    %v412 = vadd.f32 %v379, %v408
    %v413 = vadd.f32 %v380, %v409
    %v414 = vadd.f32 %v381, %v410
    %v415 = vld [vmem:[%s2] sm:$0x1]
    %v417 = vlaneseq
    %v418 = vshrl.u32 %v417, 7
    %v419 = vsub.s32 0, %v418
    %v420 = vrot.slane %v415, %v419
    %v422 = vadd.f32 %v411, %v420
    %v423 = vadd.f32 %v412, %v420
    %v424 = vadd.f32 %v413, %v420
    %v425 = vadd.f32 %v414, %v420
    %v426 = vmax.f32 %v422, 0.0
    %v427 = vmax.f32 %v423, 0.0
    %v428 = vmax.f32 %v424, 0.0
    %v429 = vmax.f32 %v425, 0.0
    %v430 = vmax.f32 %v426, %v427
    %v431 = vrot.slane %v430, 4
    %v432 = vmax.f32 %v430, %v431
    %v433 = vrot.slane %v432, 2
    %v434 = vmax.f32 %v432, %v433
    %v435 = vrot.slane %v434, 1
    %v436 = vmax.f32 %v434, %v435
    %v437 = vmax.f32 %v428, %v429
    %v438 = vrot.slane %v437, 4
    %v439 = vmax.f32 %v437, %v438
    %v440 = vrot.slane %v439, 2
    %v441 = vmax.f32 %v439, %v440
    %v442 = vrot.slane %v441, 1
    %v443 = vmax.f32 %v441, %v442
    %vm446 = vcmask 1041409
    %v447 = vsel %vm446, %v443, %v436
    %449 = vst [vmem:[#allocation7] sm:$0x3] %v447
    // Predicated region
    $region22: #{tpu_custom_call.1} parent=1 // pred_check
      _
    $region23: #{tpu_custom_call.1} parent=1 // pred_check_branch
      %451 = sbr.rel (0) target = $region25
    $region24: #{tpu_custom_call.1} parent=1 // pred_region
      %s453 = ssub.s32 32, 32
      %454 = vsyncadd [#allocation4], %s453
      %s456 = sshll.u32 [#allocation7], 4
      %s457 = int_to_ptr.vmem [resolvable:$true] %s456
      %459 = dma.vmem_to_hbm [thread:$0]  %s457, 32, %s3, [#allocation4]
    $region25: #{tpu_custom_call.1} parent=1 // pred_fallthru
      _
    // Predicated region
    $region26: #{tpu_custom_call.1} parent=1 // pred_check
      _
    $region27: #{tpu_custom_call.1} parent=1 // pred_check_branch
      %461 = sbr.rel (0) target = $region29
    $region28: #{tpu_custom_call.1} parent=1 // pred_region
      %462 = dma.done [#allocation4], 32
    $region29: #{tpu_custom_call.1} parent=1 // pred_fallthru
      _
    %463 = vsyncpa [#allocation3], 1
    %464 = vsyncpa [#allocation6], 1
    %465 = vsyncpa [#allocation4], 1

</llo_original>
